<compile_context>
chip_gen: v5e
topology: v5e:2x2
jax: 0.10.0
libtpu: 0.0.40
codegen_flags: <defaults>
</compile_context>

<pallas_src>
import functools

import jax
import jax.numpy as jnp
from jax.experimental import pallas as pl
from jax.experimental.pallas import tpu as pltpu

EPS = 1e-5
_ROW_ALIGN = 16          # block row counts kept multiples of 16 (f32 & bf16 sublane safe)


# ---------------------------------------------------------------------------
# hardware-aware tiling helpers
# ---------------------------------------------------------------------------
def _tpu_vmem_capacity_bytes():
    try:
        info = pltpu.get_tpu_info()
        cap = getattr(info, "vmem_capacity_bytes", None)
        if cap:
            return int(cap)
    except Exception:
        pass
    return 64 * 1024 * 1024          # conservative default (v7x physical VMEM)


def _pick_samples_per_block(N, L, C, bytes_per_elem, vmem_budget):
    """Largest divisor B of N whose (B*L, C) row tile fits the per-step VMEM budget."""
    max_rows = max(vmem_budget // max(C * bytes_per_elem, 1), _ROW_ALIGN)
    divisors = [d for d in range(1, N + 1) if N % d == 0]
    valid = [d for d in divisors if (d * L) % _ROW_ALIGN == 0 or d == N]
    if not valid:
        valid = [N]                  # full-extent block is always legal
    fitting = [d for d in valid if d * L <= max_rows]
    return max(fitting) if fitting else min(valid)


# ---------------------------------------------------------------------------
# in-kernel helpers
# ---------------------------------------------------------------------------
def _conv3x1_rows(a, w_ref, L, mm_dtype):
    """k=3 / stride=1 / pad=1 conv along flattened (samples, L) rows.

    a: (R, C) f32 activation tile, R = B*L (block aligned to sample boundaries).
    w_ref: (3, Cin, Cout) VMEM weight (tap-major).  Three accumulated MXU matmuls,
    taps built with pltpu.roll + per-sample boundary masks (row % L).
    """
    R = a.shape[0]
    row = jax.lax.broadcasted_iota(jnp.int32, a.shape, 0)
    pos = row % L
    zero = jnp.zeros_like(a)
    prev = jnp.where(pos == 0, zero, pltpu.roll(a, 1, 0))          # a[l-1], 0 at l = 0
    nxt = jnp.where(pos == L - 1, zero, pltpu.roll(a, R - 1, 0))   # a[l+1], 0 at l = L-1
    out = jnp.dot(prev.astype(mm_dtype), w_ref[0], preferred_element_type=jnp.float32)
    out = out + jnp.dot(a.astype(mm_dtype), w_ref[1], preferred_element_type=jnp.float32)
    out = out + jnp.dot(nxt.astype(mm_dtype), w_ref[2], preferred_element_type=jnp.float32)
    return out


def _accumulate_stats(stats_ref, h):
    """Per-core BN statistics: accumulate per-channel sum and sum-of-squares."""
    @pl.when(pl.program_id(1) == 0)
    def _():
        stats_ref[...] = jnp.zeros_like(stats_ref)

    s = jnp.sum(h, axis=0, keepdims=True)
    sq = jnp.sum(h * h, axis=0, keepdims=True)
    stats_ref[...] = stats_ref[...] + jnp.concatenate([s, sq], axis=0)


# ---------------------------------------------------------------------------
# kernels
# ---------------------------------------------------------------------------
def _conv_stats_kernel(x_ref, w_ref, h_ref, stats_ref, *, L, mm_dtype):
    """pass A: h1 = conv1(x); accumulate per-core BN1 statistics."""
    x = x_ref[...].astype(jnp.float32)
    h = _conv3x1_rows(x, w_ref, L, mm_dtype)
    h_store = h.astype(h_ref.dtype)
    h_ref[...] = h_store
    _accumulate_stats(stats_ref, h_store.astype(jnp.float32))


def _bn_relu_conv_stats_kernel(h1_ref, w_ref, scale_ref, shift_ref, h2_ref, stats_ref,
                               *, L, mm_dtype):
    """pass B: a = relu(bn1(h1)); h2 = conv2(a); accumulate per-core BN2 statistics."""
    a = jnp.maximum(h1_ref[...].astype(jnp.float32) * scale_ref[...] + shift_ref[...], 0.0)
    h = _conv3x1_rows(a, w_ref, L, mm_dtype)
    h_store = h.astype(h2_ref.dtype)
    h2_ref[...] = h_store
    _accumulate_stats(stats_ref, h_store.astype(jnp.float32))


def _bn_residual_relu_kernel(h2_ref, x_ref, scale_ref, shift_ref, o_ref):
    """pass C: out = relu(bn2(h2) + x)."""
    y = (h2_ref[...].astype(jnp.float32) * scale_ref[...] + shift_ref[...]
         + x_ref[...].astype(jnp.float32))
    o_ref[...] = jnp.maximum(y, 0.0).astype(o_ref.dtype)


# ---------------------------------------------------------------------------
# host-side plumbing
# ---------------------------------------------------------------------------
def _as_row(v):
    return jnp.asarray(v, jnp.float32).reshape(1, -1)


def _tap_weight(w_oik, dtype):
    """PyTorch Conv1d weight (Cout, Cin, 3) -> tap-major (3, Cin, Cout)."""
    return jnp.transpose(w_oik.astype(jnp.float32), (2, 1, 0)).astype(dtype)


def _bn_scale_shift(stats, gamma, beta, count):
    """(sum, sumsq) -> per-channel (scale, shift) for training-mode BatchNorm1d."""
    mean = stats[0:1, :] / count
    var = jnp.maximum(stats[1:2, :] / count - mean * mean, 0.0)     # biased variance
    scale = gamma * jax.lax.rsqrt(var + EPS)
    shift = beta - mean * scale
    return scale, shift


def basicblock_forward_nlc(x_nlc, params, *, compute_dtype=jnp.bfloat16):
    """BasicBlock forward. x_nlc: (N, L, C) -> (N, L, C) float32."""
    N, L, C = x_nlc.shape
    assert params["w1"].shape == (C, C, 3) and params["w2"].shape == (C, C, 3), (
        "BasicBlock with stride=1 / downsample=None requires inplanes == planes")
    R = N * L
    count = float(R)
    cb = jnp.dtype(compute_dtype).itemsize

    vmem_cap = _tpu_vmem_capacity_bytes()
    vmem_limit = int(vmem_cap * 0.8)
    tile_budget = vmem_cap // 3

    # Channels stay at the TRUE C everywhere; rows = flattened (N, L) so each grid step
    # is one large, lane-dense row tile (no host-side pad/slice, no Cp-inflated streams).
    x2 = x_nlc.reshape(R, C).astype(jnp.float32)
    w1 = _tap_weight(params["w1"], compute_dtype)
    w2 = _tap_weight(params["w2"], compute_dtype)
    g1, b1 = _as_row(params["g1"]), _as_row(params["b1"])
    g2, b2 = _as_row(params["g2"]), _as_row(params["b2"])

    # ---- tiling: B whole samples per grid step --------------------------------------
    B_ab = _pick_samples_per_block(N, L, C, bytes_per_elem=28 + 5 * cb,
                                   vmem_budget=tile_budget)
    NB = N // B_ab
    NC = 2 if NB % 2 == 0 else 1          # per-core stats partials -> v7x megacore
    NBpc = NB // NC
    RB = B_ab * L

    B_c = _pick_samples_per_block(N, L, C, bytes_per_elem=24 + 2 * cb,
                                  vmem_budget=tile_budget)
    RC = B_c * L
    NBc = N // B_c

    row_ab_spec = pl.BlockSpec((RB, C), lambda c, b: (c * NBpc + b, 0))
    w_spec = pl.BlockSpec((3, C, C), lambda c, b: (0, 0, 0))        # constant -> resident
    vec_ab_spec = pl.BlockSpec((1, C), lambda c, b: (0, 0))         # constant -> resident
    stats_spec = pl.BlockSpec((None, 2, C), lambda c, b: (c, 0, 0)) # per-core accumulator

    acc_params = pltpu.CompilerParams(
        dimension_semantics=("parallel", "arbitrary"),
        vmem_limit_bytes=vmem_limit)
    par_params = pltpu.CompilerParams(
        dimension_semantics=("parallel",),
        vmem_limit_bytes=vmem_limit)

    conv_flops = 2 * R * 3 * C * C

    # ---- pass A: conv1 + BN1 statistics ----------------------------------------------
    h1, stats1 = pl.pallas_call(
        functools.partial(_conv_stats_kernel, L=L, mm_dtype=compute_dtype),
        grid=(NC, NBpc),
        in_specs=[row_ab_spec, w_spec],
        out_specs=(row_ab_spec, stats_spec),
        out_shape=(jax.ShapeDtypeStruct((R, C), compute_dtype),
                   jax.ShapeDtypeStruct((NC, 2, C), jnp.float32)),
        compiler_params=acc_params,
        cost_estimate=pl.CostEstimate(
            flops=conv_flops, transcendentals=0,
            bytes_accessed=R * C * (4 + cb) + 3 * C * C * cb + NC * 2 * C * 4),
    )(x2, w1)
    scale1, shift1 = _bn_scale_shift(jnp.sum(stats1, axis=0), g1, b1, count)

    # ---- pass B: bn1 + relu + conv2 + BN2 statistics ----------------------------------
    h2, stats2 = pl.pallas_call(
        functools.partial(_bn_relu_conv_stats_kernel, L=L, mm_dtype=compute_dtype),
        grid=(NC, NBpc),
        in_specs=[row_ab_spec, w_spec, vec_ab_spec, vec_ab_spec],
        out_specs=(row_ab_spec, stats_spec),
        out_shape=(jax.ShapeDtypeStruct((R, C), compute_dtype),
                   jax.ShapeDtypeStruct((NC, 2, C), jnp.float32)),
        compiler_params=acc_params,
        cost_estimate=pl.CostEstimate(
            flops=conv_flops, transcendentals=0,
            bytes_accessed=2 * R * C * cb + 3 * C * C * cb + NC * 2 * C * 4),
    )(h1, w2, scale1, shift1)
    scale2, shift2 = _bn_scale_shift(jnp.sum(stats2, axis=0), g2, b2, count)

    # ---- pass C: bn2 + residual add + relu (pure streaming, fully parallel) -----------
    row_c_spec = pl.BlockSpec((RC, C), lambda b: (b, 0))
    vec_c_spec = pl.BlockSpec((1, C), lambda b: (0, 0))
    out = pl.pallas_call(
        _bn_residual_relu_kernel,
        grid=(NBc,),
        in_specs=[row_c_spec, row_c_spec, vec_c_spec, vec_c_spec],
        out_specs=row_c_spec,
        out_shape=jax.ShapeDtypeStruct((R, C), jnp.float32),
        compiler_params=par_params,
        cost_estimate=pl.CostEstimate(
            flops=4 * R * C, transcendentals=0,
            bytes_accessed=R * C * (cb + 8)),
    )(h2, x2, scale2, shift2)

    return out.reshape(N, L, C)


def basicblock_forward(x_ncl, params, *, compute_dtype=jnp.bfloat16):
    """PyTorch-layout entry point: x (N, C, L) -> (N, C, L).

    NOTE(perf): these NCL<->NLC transposes cost two extra HBM passes; callers that can
    keep activations in NLC should call basicblock_forward_nlc directly.
    """
    x_nlc = jnp.transpose(x_ncl, (0, 2, 1))
    out = basicblock_forward_nlc(x_nlc, params, compute_dtype=compute_dtype)
    return jnp.transpose(out, (0, 2, 1))


# ---------------------------------------------------------------------------
# reference + test
# ---------------------------------------------------------------------------
def init_params(key, planes):
    ks = jax.random.split(key, 6)
    return {
        "w1": 0.1 * jax.random.normal(ks[0], (planes, planes, 3), jnp.float32),
        "w2": 0.1 * jax.random.normal(ks[1], (planes, planes, 3), jnp.float32),
        "g1": 1.0 + 0.1 * jax.random.normal(ks[2], (planes,), jnp.float32),
        "b1": 0.1 * jax.random.normal(ks[3], (planes,), jnp.float32),
        "g2": 1.0 + 0.1 * jax.random.normal(ks[4], (planes,), jnp.float32),
        "b2": 0.1 * jax.random.normal(ks[5], (planes,), jnp.float32),
    }


def reference_forward(x_ncl, params):
    """Pure-JAX mirror of the PyTorch BasicBlock forward (training-mode BatchNorm1d)."""
    x = x_ncl.astype(jnp.float32)                                   # (N, C, L)
    L = x.shape[2]

    def conv3x1(h, w_oik):                                          # w: (Cout, Cin, 3)
        hp = jnp.pad(h, ((0, 0), (0, 0), (1, 1)))
        return (jnp.einsum("ncl,oc->nol", hp[:, :, 0:L], w_oik[:, :, 0])
                + jnp.einsum("ncl,oc->nol", hp[:, :, 1:L + 1], w_oik[:, :, 1])
                + jnp.einsum("ncl,oc->nol", hp[:, :, 2:L + 2], w_oik[:, :, 2]))

    def bn_train(h, gamma, beta):                                   # biased stats, (N, L)
        mean = jnp.mean(h, axis=(0, 2), keepdims=True)
        var = jnp.mean((h - mean) ** 2, axis=(0, 2), keepdims=True)
        return ((h - mean) * jax.lax.rsqrt(var + EPS) * gamma[None, :, None]
                + beta[None, :, None])

    out = jax.nn.relu(bn_train(conv3x1(x, params["w1"]), params["g1"], params["b1"]))
    out = bn_train(conv3x1(out, params["w2"]), params["g2"], params["b2"])
    return jax.nn.relu(out + x)


if __name__ == "__main__":
    # BasicBlock with stride=1 / downsample=None  =>  inplanes == planes.
    N, C, L = 4, 16, 32
    key = jax.random.PRNGKey(0)
    kx, kp = jax.random.split(key)
    x = jax.random.normal(kx, (N, C, L), jnp.float32)               # PyTorch NCL input
    params = init_params(kp, C)

    ref = reference_forward(x, params)

    # f32 path
    out_f32 = jax.block_until_ready(
        basicblock_forward(x, params, compute_dtype=jnp.float32))
    assert out_f32.shape == (N, C, L)
    assert jnp.allclose(out_f32, ref, atol=1e-3, rtol=1e-3), "f32 Pallas output != reference"

    # default path: bf16 MXU operands / HBM intermediates; BN stats + residual stay f32.
    out_bf16 = jax.block_until_ready(basicblock_forward(x, params))
    assert out_bf16.shape == (N, C, L)
    assert jnp.allclose(out_bf16, ref, atol=5e-2, rtol=5e-2), "bf16 Pallas output != reference"

    print("KERNEL_OK")
</pallas_src>

<mosaic_0001>
module attributes {stable_mosaic.version = 11 : i64} {
  func.func @_conv_stats_kernel(%arg0: i32, %arg1: i32, %arg2: memref<128x16xf32, #tpu.memory_space<vmem>>, %arg3: memref<3x16x16xf32, #tpu.memory_space<vmem>>, %arg4: memref<128x16xf32, #tpu.memory_space<vmem>>, %arg5: memref<1x2x16xf32, #tpu.memory_space<vmem>>) attributes {dimension_semantics = [#tpu.dimension_semantics<parallel>, #tpu.dimension_semantics<arbitrary>], iteration_bounds = array<i64: 1, 1>, scalar_prefetch = 0 : i64, scratch_operands = 0 : i64, tpu.core_type = #tpu.core_type<tc>, window_params = [{transform_indices = @transform_0, window_bounds = array<i64: 128, 16>}, {pipeline_mode = #tpu.pipeline_mode<synchronous>, transform_indices = @transform_1, window_bounds = array<i64: 3, 16, 16>}, {transform_indices = @transform_2, window_bounds = array<i64: 128, 16>}, {transform_indices = @transform_3, window_bounds = array<i64: 1, 2, 16>}]} {
    %c0 = arith.constant 0 : index
    %c0_0 = arith.constant 0 : index
    %0 = vector.load %arg2[%c0, %c0_0] : memref<128x16xf32, #tpu.memory_space<vmem>>, vector<128x16xf32>
    %1 = tpu.iota {dimensions = array<i32: 0>} : vector<128x16xi32>
    %c32_i32 = arith.constant 32 : i32
    %c0_i32 = arith.constant 0 : i32
    %2 = arith.cmpi eq, %c32_i32, %c0_i32 : i32
    %c1_i32 = arith.constant 1 : i32
    %3 = arith.select %2, %c1_i32, %c32_i32 : i32
    %4 = vector.broadcast %3 : i32 to vector<128x16xi32>
    %5 = arith.remsi %1, %4 : vector<128x16xi32>
    %c0_i32_1 = arith.constant 0 : i32
    %6 = vector.broadcast %c0_i32_1 : i32 to vector<128x16xi32>
    %7 = arith.cmpi ne, %5, %6 : vector<128x16xi32>
    %c0_i32_2 = arith.constant 0 : i32
    %8 = vector.broadcast %c0_i32_2 : i32 to vector<128x16xi32>
    %9 = arith.cmpi slt, %5, %8 : vector<128x16xi32>
    %c0_i32_3 = arith.constant 0 : i32
    %10 = arith.cmpi slt, %3, %c0_i32_3 : i32
    %11 = vector.broadcast %10 : i1 to vector<128x16xi1>
    %12 = vector.broadcast %11 : vector<128x16xi1> to vector<128x16xi1>
    %13 = arith.xori %9, %12 : vector<128x16xi1>
    %14 = arith.andi %13, %7 : vector<128x16xi1>
    %15 = vector.broadcast %3 : i32 to vector<128x16xi32>
    %16 = arith.addi %5, %15 : vector<128x16xi32>
    %17 = arith.select %14, %16, %5 : vector<128x16xi1>, vector<128x16xi32>
    %cst = arith.constant 0.000000e+00 : f32
    %18 = vector.broadcast %cst : f32 to vector<128x16xf32>
    %c0_i32_4 = arith.constant 0 : i32
    %19 = vector.broadcast %c0_i32_4 : i32 to vector<128x16xi32>
    %20 = arith.cmpi eq, %17, %19 : vector<128x16xi32>
    %c1_i32_5 = arith.constant 1 : i32
    %21 = tpu.dynamic_rotate %0 by %c1_i32_5 dim 0 : vector<128x16xf32>, i32 -> vector<128x16xf32>
    %22 = arith.select %20, %18, %21 : vector<128x16xi1>, vector<128x16xf32>
    %c31_i32 = arith.constant 31 : i32
    %23 = vector.broadcast %c31_i32 : i32 to vector<128x16xi32>
    %24 = arith.cmpi eq, %17, %23 : vector<128x16xi32>
    %c127_i32 = arith.constant 127 : i32
    %25 = tpu.dynamic_rotate %0 by %c127_i32 dim 0 : vector<128x16xf32>, i32 -> vector<128x16xf32>
    %26 = arith.select %24, %18, %25 : vector<128x16xi1>, vector<128x16xf32>
    %c0_6 = arith.constant 0 : index
    %c0_7 = arith.constant 0 : index
    %c0_8 = arith.constant 0 : index
    %27 = vector.load %arg3[%c0_6, %c0_7, %c0_8] : memref<3x16x16xf32, #tpu.memory_space<vmem>>, vector<1x16x16xf32>
    %28 = vector.shape_cast %27 : vector<1x16x16xf32> to vector<16x16xf32>
    %cst_9 = arith.constant dense<0.000000e+00> : vector<128x16xf32>
    %29 = tpu.matmul %22, %28, %cst_9 {dimension_numbers = #tpu.dot_dimension_numbers<[1], [0], [0], [1], [0, 0, 1, 1], [], []>} : vector<128x16xf32>, vector<16x16xf32>, vector<128x16xf32> -> vector<128x16xf32>
    %c1 = arith.constant 1 : index
    %c0_10 = arith.constant 0 : index
    %c0_11 = arith.constant 0 : index
    %30 = vector.load %arg3[%c1, %c0_10, %c0_11] : memref<3x16x16xf32, #tpu.memory_space<vmem>>, vector<1x16x16xf32>
    %31 = vector.shape_cast %30 : vector<1x16x16xf32> to vector<16x16xf32>
    %cst_12 = arith.constant dense<0.000000e+00> : vector<128x16xf32>
    %32 = tpu.matmul %0, %31, %cst_12 {dimension_numbers = #tpu.dot_dimension_numbers<[1], [0], [0], [1], [0, 0, 1, 1], [], []>} : vector<128x16xf32>, vector<16x16xf32>, vector<128x16xf32> -> vector<128x16xf32>
    %33 = arith.addf %29, %32 : vector<128x16xf32>
    %c2 = arith.constant 2 : index
    %c0_13 = arith.constant 0 : index
    %c0_14 = arith.constant 0 : index
    %34 = vector.load %arg3[%c2, %c0_13, %c0_14] : memref<3x16x16xf32, #tpu.memory_space<vmem>>, vector<1x16x16xf32>
    %35 = vector.shape_cast %34 : vector<1x16x16xf32> to vector<16x16xf32>
    %cst_15 = arith.constant dense<0.000000e+00> : vector<128x16xf32>
    %36 = tpu.matmul %26, %35, %cst_15 {dimension_numbers = #tpu.dot_dimension_numbers<[1], [0], [0], [1], [0, 0, 1, 1], [], []>} : vector<128x16xf32>, vector<16x16xf32>, vector<128x16xf32> -> vector<128x16xf32>
    %37 = arith.addf %33, %36 : vector<128x16xf32>
    %c0_16 = arith.constant 0 : index
    %c0_17 = arith.constant 0 : index
    %38 = vector.load %arg4[%c0_16, %c0_17] : memref<128x16xf32, #tpu.memory_space<vmem>>, vector<128x16xf32>
    tpu.vector_store %arg4[%c0_16, %c0_17], %37 {strides = array<i32>} : memref<128x16xf32, #tpu.memory_space<vmem>>, vector<128x16xf32>,
    %c0_i32_18 = arith.constant 0 : i32
    %39 = arith.cmpi eq, %arg1, %c0_i32_18 : i32
    %40 = arith.extui %39 : i1 to i32
    %c0_i32_19 = arith.constant 0 : i32
    %41 = arith.cmpi ne, %40, %c0_i32_19 : i32
    scf.if %41 {
      %cst_28 = arith.constant 0.000000e+00 : f32
      %54 = vector.broadcast %cst_28 : f32 to vector<2x16xf32>
      %c0_29 = arith.constant 0 : index
      %c0_30 = arith.constant 0 : index
      %c0_31 = arith.constant 0 : index
      %55 = vector.load %arg5[%c0_29, %c0_30, %c0_31] : memref<1x2x16xf32, #tpu.memory_space<vmem>>, vector<1x2x16xf32>
      %56 = vector.shape_cast %55 : vector<1x2x16xf32> to vector<2x16xf32>
      %57 = vector.shape_cast %54 : vector<2x16xf32> to vector<1x2x16xf32>
      tpu.vector_store %arg5[%c0_29, %c0_30, %c0_31], %57 {strides = array<i32>} : memref<1x2x16xf32, #tpu.memory_space<vmem>>, vector<1x2x16xf32>,
    } else {
    }
    %cst_20 = arith.constant dense<0.000000e+00> : vector<16xf32>
    %42 = vector.multi_reduction <add>, %37, %cst_20 [0] : vector<128x16xf32> to vector<16xf32>
    %43 = vector.shape_cast %42 : vector<16xf32> to vector<1x16xf32>
    %44 = arith.mulf %37, %37 : vector<128x16xf32>
    %cst_21 = arith.constant dense<0.000000e+00> : vector<16xf32>
    %45 = vector.multi_reduction <add>, %44, %cst_21 [0] : vector<128x16xf32> to vector<16xf32>
    %46 = vector.shape_cast %45 : vector<16xf32> to vector<1x16xf32>
    %c0_22 = arith.constant 0 : index
    %c0_23 = arith.constant 0 : index
    %c0_24 = arith.constant 0 : index
    %47 = vector.load %arg5[%c0_22, %c0_23, %c0_24] : memref<1x2x16xf32, #tpu.memory_space<vmem>>, vector<1x2x16xf32>
    %48 = vector.shape_cast %47 : vector<1x2x16xf32> to vector<2x16xf32>
    %49 = tpu.concatenate %43, %46 in 0 : vector<1x16xf32>, vector<1x16xf32> -> vector<2x16xf32>
    %50 = arith.addf %48, %49 : vector<2x16xf32>
    %c0_25 = arith.constant 0 : index
    %c0_26 = arith.constant 0 : index
    %c0_27 = arith.constant 0 : index
    %51 = vector.load %arg5[%c0_25, %c0_26, %c0_27] : memref<1x2x16xf32, #tpu.memory_space<vmem>>, vector<1x2x16xf32>
    %52 = vector.shape_cast %51 : vector<1x2x16xf32> to vector<2x16xf32>
    %53 = vector.shape_cast %50 : vector<2x16xf32> to vector<1x2x16xf32>
    tpu.vector_store %arg5[%c0_25, %c0_26, %c0_27], %53 {strides = array<i32>} : memref<1x2x16xf32, #tpu.memory_space<vmem>>, vector<1x2x16xf32>,
    return
  }
  func.func @transform_0(%arg0: i32, %arg1: i32) -> (i32, i32) {
    %c1_i32 = arith.constant 1 : i32
    %0 = arith.muli %arg0, %c1_i32 : i32
    %1 = arith.addi %0, %arg1 : i32
    %c0_i32 = arith.constant 0 : i32
    %c0_i32_0 = arith.constant 0 : i32
    return %1, %c0_i32 : i32, i32
  }
  func.func @transform_1(%arg0: i32, %arg1: i32) -> (i32, i32, i32) {
    %c0_i32 = arith.constant 0 : i32
    %c0_i32_0 = arith.constant 0 : i32
    %c0_i32_1 = arith.constant 0 : i32
    %c0_i32_2 = arith.constant 0 : i32
    return %c0_i32, %c0_i32_0, %c0_i32_1 : i32, i32, i32
  }
  func.func @transform_2(%arg0: i32, %arg1: i32) -> (i32, i32) {
    %c1_i32 = arith.constant 1 : i32
    %0 = arith.muli %arg0, %c1_i32 : i32
    %1 = arith.addi %0, %arg1 : i32
    %c0_i32 = arith.constant 0 : i32
    %c0_i32_0 = arith.constant 0 : i32
    return %1, %c0_i32 : i32, i32
  }
  func.func @transform_3(%arg0: i32, %arg1: i32) -> (i32, i32, i32) {
    %c0_i32 = arith.constant 0 : i32
    %c0_i32_0 = arith.constant 0 : i32
    %c0_i32_1 = arith.constant 0 : i32
    return %arg0, %c0_i32, %c0_i32_0 : i32, i32, i32
  }
}

</mosaic_0001>

<llo_original>
// kernel: tpu_custom_call.1
$region0: #{tpu_custom_call.1}
  #allocation0 [shape = 'u32[]', space=smem, size = 0x4, offset = 0x4, fixed_abs, tag = 'smem constant byte address 0x4 - core index']
  #allocation1 [shape = 'u32[72,128]{1,0:T(1,128)}', space=vmem, size = 0x9000, scoped, tag = 'internal scratch']
  %s0 = inlined_call_operand.vmem [shape: f32[128,16], index: 0, kind: input, shape index: {}]
  %s1 = inlined_call_operand.vmem [shape: f32[3,16,16], index: 1, kind: input, shape index: {}]
  %s2 = inlined_call_operand.vmem [shape: f32[128,16], index: 2, kind: output, shape index: {0}]
  %s3 = inlined_call_operand.hbm [shape: f32[1,2,16], index: 3, kind: output, shape index: {1}]
  %4 = xla_tuple %s2, %s3
  %s5 = sld [smem:[#allocation0]]
  $region30: #{tpu_custom_call.1} parent=0
    _
  %s7 = ssub.s32 1, %s5
  %s8 = scalar_select 0, %s7, %s5
  $region1: #{tpu_custom_call.1} parent=0
    #allocation2 [shape = 'u8[1024]{0}', space=vmem, size = 0x400, scoped, tag = 'output window, operand 1, single buffered']
    #allocation3 [shape = 's32[1]{0}', space=sflag, size = 0x4, scoped, tag = 'scoped memory for tpu_custom_call.1']
    %9 = vsyncpa [#allocation3], 0
    // Predicated region
    $region2: #{tpu_custom_call.1} parent=1 // pred_check
      _
    $region3: #{tpu_custom_call.1} parent=1 // pred_check_branch
      %11 = sbr.rel (0) target = $region5
    $region4: #{tpu_custom_call.1} parent=1 // pred_region
      %s12 = sadd.s32 0, 0
      %s13 = smul.u32 16, %s12
      %p14 = scmp.lt.s32.totalorder %s13, 15
      %s15 = scalar_select %p14, %s13, 15
      %s16 = smul.addr %s15, 8
      %s17 = scalar_lea.vmem %s0, %s16
      %s18 = sadd.s32 0, 0
      %s19 = smul.u32 16, %s18
    $region5: #{tpu_custom_call.1} parent=1 // pred_fallthru
      _
    // Predicated region
    $region6: #{tpu_custom_call.1} parent=1 // pred_check
      _
    $region7: #{tpu_custom_call.1} parent=1 // pred_check_branch
      %21 = sbr.rel (0) target = $region9
    $region8: #{tpu_custom_call.1} parent=1 // pred_region
      _
    $region9: #{tpu_custom_call.1} parent=1 // pred_fallthru
      _
    %s22 = sadd.s32 0, 0
    %s23 = smul.u32 16, %s22
    %p24 = scmp.lt.s32.totalorder %s23, 15
    %s25 = scalar_select %p24, %s23, 15
    %s26 = smul.addr %s25, 8
    %s27 = scalar_lea.vmem %s0, %s26
    %s28 = sadd.s32 0, 0
    %s29 = smul.u32 16, %s28
    %p30 = scmp.lt.s32.totalorder %s29, 15
    %s31 = scalar_select %p30, %s29, 15
    %s32 = smul.addr %s31, 8
    %s33 = scalar_lea.vmem %s2, %s32
    %s34 = sadd.s32 0, 0
    %s35 = smul.u32 16, %s34
    %p36 = scmp.lt.s32.totalorder %s35, 15
    %s37 = scalar_select %p36, %s35, 15
    %s38 = smul.addr %s37, 8
    %s39 = scalar_lea.vmem %s0, %s38
    %s40 = sadd.s32 0, 0
    %s41 = smul.u32 16, %s40
    %s42 = sadd.s32 0, 0
    %s43 = smul.u32 16, %s42
    %p44 = scmp.lt.s32.totalorder %s43, 15
    %s45 = scalar_select %p44, %s43, 15
    %s46 = smul.addr %s45, 8
    %s47 = scalar_lea.vmem %s2, %s46
    %s48 = sadd.s32 0, 0
    %s49 = smul.u32 16, %s48
    %v50 = vld [vmem:[%s39] sm:$0xff]
    %v51 = vld [vmem:[%s39 + $0x8] sm:$0xff]
    %v52 = vld [vmem:[%s39 + $0x10] sm:$0xff]
    %v53 = vld [vmem:[%s39 + $0x18] sm:$0xff]
    %v54 = vld [vmem:[%s39 + $0x20] sm:$0xff]
    %v55 = vld [vmem:[%s39 + $0x28] sm:$0xff]
    %v56 = vld [vmem:[%s39 + $0x30] sm:$0xff]
    %v57 = vld [vmem:[%s39 + $0x38] sm:$0xff]
    %v58 = vld [vmem:[%s39 + $0x40] sm:$0xff]
    %v59 = vld [vmem:[%s39 + $0x48] sm:$0xff]
    %v60 = vld [vmem:[%s39 + $0x50] sm:$0xff]
    %v61 = vld [vmem:[%s39 + $0x58] sm:$0xff]
    %v62 = vld [vmem:[%s39 + $0x60] sm:$0xff]
    %v63 = vld [vmem:[%s39 + $0x68] sm:$0xff]
    %v64 = vld [vmem:[%s39 + $0x70] sm:$0xff]
    %v65 = vld [vmem:[%s39 + $0x78] sm:$0xff]
    %v66 = vlaneseq
    %v67 = vshrl.u32 %v66, 7
    %v68 = vadd.s32 %v67, 8
    %v69 = vadd.s32 %v67, 16
    %v70 = vadd.s32 %v67, 24
    %v71 = vadd.s32 %v67, 32
    %v72 = vadd.s32 %v67, 40
    %v73 = vadd.s32 %v67, 48
    %v74 = vadd.s32 %v67, 56
    %v75 = vadd.s32 %v67, 64
    %v76 = vadd.s32 %v67, 72
    %v77 = vadd.s32 %v67, 80
    %v78 = vadd.s32 %v67, 88
    %v79 = vadd.s32 %v67, 96
    %v80 = vadd.s32 %v67, 104
    %v81 = vadd.s32 %v67, 112
    %v82 = vadd.s32 %v67, 120
    %vm83 = vcmp.lt.s32.totalorder %v67, 0
    %v84 = vsub.s32 0, %v67
    %v85 = vsel %vm83, %v84, %v67
    %v86 = vshrl.u32 %v85, 5
    %v87 = vand.u32 %v85, 31
    %v88 = vsub.s32 0, %v87
    %v89 = vsel %vm83, %v88, %v87
    %vm90 = vcmp.lt.s32.totalorder %v68, 0
    %v91 = vsub.s32 0, %v68
    %v92 = vsel %vm90, %v91, %v68
    %v93 = vshrl.u32 %v92, 5
    %v94 = vand.u32 %v92, 31
    %v95 = vsub.s32 0, %v94
    %v96 = vsel %vm90, %v95, %v94
    %vm97 = vcmp.lt.s32.totalorder %v69, 0
    %v98 = vsub.s32 0, %v69
    %v99 = vsel %vm97, %v98, %v69
    %v100 = vshrl.u32 %v99, 5
    %v101 = vand.u32 %v99, 31
    %v102 = vsub.s32 0, %v101
    %v103 = vsel %vm97, %v102, %v101
    %vm104 = vcmp.lt.s32.totalorder %v70, 0
    %v105 = vsub.s32 0, %v70
    %v106 = vsel %vm104, %v105, %v70
    %v107 = vshrl.u32 %v106, 5
    %v108 = vand.u32 %v106, 31
    %v109 = vsub.s32 0, %v108
    %v110 = vsel %vm104, %v109, %v108
    %vm111 = vcmp.lt.s32.totalorder %v71, 0
    %v112 = vsub.s32 0, %v71
    %v113 = vsel %vm111, %v112, %v71
    %v114 = vshrl.u32 %v113, 5
    %v115 = vand.u32 %v113, 31
    %v116 = vsub.s32 0, %v115
    %v117 = vsel %vm111, %v116, %v115
    %vm118 = vcmp.lt.s32.totalorder %v72, 0
    %v119 = vsub.s32 0, %v72
    %v120 = vsel %vm118, %v119, %v72
    %v121 = vshrl.u32 %v120, 5
    %v122 = vand.u32 %v120, 31
    %v123 = vsub.s32 0, %v122
    %v124 = vsel %vm118, %v123, %v122
    %vm125 = vcmp.lt.s32.totalorder %v73, 0
    %v126 = vsub.s32 0, %v73
    %v127 = vsel %vm125, %v126, %v73
    %v128 = vshrl.u32 %v127, 5
    %v129 = vand.u32 %v127, 31
    %v130 = vsub.s32 0, %v129
    %v131 = vsel %vm125, %v130, %v129
    %vm132 = vcmp.lt.s32.totalorder %v74, 0
    %v133 = vsub.s32 0, %v74
    %v134 = vsel %vm132, %v133, %v74
    %v135 = vshrl.u32 %v134, 5
    %v136 = vand.u32 %v134, 31
    %v137 = vsub.s32 0, %v136
    %v138 = vsel %vm132, %v137, %v136
    %vm139 = vcmp.lt.s32.totalorder %v75, 0
    %v140 = vsub.s32 0, %v75
    %v141 = vsel %vm139, %v140, %v75
    %v142 = vshrl.u32 %v141, 5
    %v143 = vand.u32 %v141, 31
    %v144 = vsub.s32 0, %v143
    %v145 = vsel %vm139, %v144, %v143
    %vm146 = vcmp.lt.s32.totalorder %v76, 0
    %v147 = vsub.s32 0, %v76
    %v148 = vsel %vm146, %v147, %v76
    %v149 = vshrl.u32 %v148, 5
    %v150 = vand.u32 %v148, 31
    %v151 = vsub.s32 0, %v150
    %v152 = vsel %vm146, %v151, %v150
    %vm153 = vcmp.lt.s32.totalorder %v77, 0
    %v154 = vsub.s32 0, %v77
    %v155 = vsel %vm153, %v154, %v77
    %v156 = vshrl.u32 %v155, 5
    %v157 = vand.u32 %v155, 31
    %v158 = vsub.s32 0, %v157
    %v159 = vsel %vm153, %v158, %v157
    %vm160 = vcmp.lt.s32.totalorder %v78, 0
    %v161 = vsub.s32 0, %v78
    %v162 = vsel %vm160, %v161, %v78
    %v163 = vshrl.u32 %v162, 5
    %v164 = vand.u32 %v162, 31
    %v165 = vsub.s32 0, %v164
    %v166 = vsel %vm160, %v165, %v164
    %vm167 = vcmp.lt.s32.totalorder %v79, 0
    %v168 = vsub.s32 0, %v79
    %v169 = vsel %vm167, %v168, %v79
    %v170 = vshrl.u32 %v169, 5
    %v171 = vand.u32 %v169, 31
    %v172 = vsub.s32 0, %v171
    %v173 = vsel %vm167, %v172, %v171
    %vm174 = vcmp.lt.s32.totalorder %v80, 0
    %v175 = vsub.s32 0, %v80
    %v176 = vsel %vm174, %v175, %v80
    %v177 = vshrl.u32 %v176, 5
    %v178 = vand.u32 %v176, 31
    %v179 = vsub.s32 0, %v178
    %v180 = vsel %vm174, %v179, %v178
    %vm181 = vcmp.lt.s32.totalorder %v81, 0
    %v182 = vsub.s32 0, %v81
    %v183 = vsel %vm181, %v182, %v81
    %v184 = vshrl.u32 %v183, 5
    %v185 = vand.u32 %v183, 31
    %v186 = vsub.s32 0, %v185
    %v187 = vsel %vm181, %v186, %v185
    %vm188 = vcmp.lt.s32.totalorder %v82, 0
    %v189 = vsub.s32 0, %v82
    %v190 = vsel %vm188, %v189, %v82
    %v191 = vshrl.u32 %v190, 5
    %v192 = vand.u32 %v190, 31
    %v193 = vsub.s32 0, %v192
    %v194 = vsel %vm188, %v193, %v192
    %vm195 = vcmp.ne.s32.totalorder %v89, 0
    %vm196 = vcmp.ne.s32.totalorder %v96, 0
    %vm197 = vcmp.ne.s32.totalorder %v103, 0
    %vm198 = vcmp.ne.s32.totalorder %v110, 0
    %vm199 = vcmp.ne.s32.totalorder %v117, 0
    %vm200 = vcmp.ne.s32.totalorder %v124, 0
    %vm201 = vcmp.ne.s32.totalorder %v131, 0
    %vm202 = vcmp.ne.s32.totalorder %v138, 0
    %vm203 = vcmp.ne.s32.totalorder %v145, 0
    %vm204 = vcmp.ne.s32.totalorder %v152, 0
    %vm205 = vcmp.ne.s32.totalorder %v159, 0
    %vm206 = vcmp.ne.s32.totalorder %v166, 0
    %vm207 = vcmp.ne.s32.totalorder %v173, 0
    %vm208 = vcmp.ne.s32.totalorder %v180, 0
    %vm209 = vcmp.ne.s32.totalorder %v187, 0
    %vm210 = vcmp.ne.s32.totalorder %v194, 0
    %vm211 = vcmp.lt.s32.totalorder %v89, 0
    %vm212 = vcmp.lt.s32.totalorder %v96, 0
    %vm213 = vcmp.lt.s32.totalorder %v103, 0
    %vm214 = vcmp.lt.s32.totalorder %v110, 0
    %vm215 = vcmp.lt.s32.totalorder %v117, 0
    %vm216 = vcmp.lt.s32.totalorder %v124, 0
    %vm217 = vcmp.lt.s32.totalorder %v131, 0
    %vm218 = vcmp.lt.s32.totalorder %v138, 0
    %vm219 = vcmp.lt.s32.totalorder %v145, 0
    %vm220 = vcmp.lt.s32.totalorder %v152, 0
    %vm221 = vcmp.lt.s32.totalorder %v159, 0
    %vm222 = vcmp.lt.s32.totalorder %v166, 0
    %vm223 = vcmp.lt.s32.totalorder %v173, 0
    %vm224 = vcmp.lt.s32.totalorder %v180, 0
    %vm225 = vcmp.lt.s32.totalorder %v187, 0
    %vm226 = vcmp.lt.s32.totalorder %v194, 0
    %vm227 = vmand %vm211, %vm195
    %vm228 = vmand %vm212, %vm196
    %vm229 = vmand %vm213, %vm197
    %vm230 = vmand %vm214, %vm198
    %vm231 = vmand %vm215, %vm199
    %vm232 = vmand %vm216, %vm200
    %vm233 = vmand %vm217, %vm201
    %vm234 = vmand %vm218, %vm202
    %vm235 = vmand %vm219, %vm203
    %vm236 = vmand %vm220, %vm204
    %vm237 = vmand %vm221, %vm205
    %vm238 = vmand %vm222, %vm206
    %vm239 = vmand %vm223, %vm207
    %vm240 = vmand %vm224, %vm208
    %vm241 = vmand %vm225, %vm209
    %vm242 = vmand %vm226, %vm210
    %v243 = vadd.s32 %v89, 32
    %v244 = vadd.s32 %v96, 32
    %v245 = vadd.s32 %v103, 32
    %v246 = vadd.s32 %v110, 32
    %v247 = vadd.s32 %v117, 32
    %v248 = vadd.s32 %v124, 32
    %v249 = vadd.s32 %v131, 32
    %v250 = vadd.s32 %v138, 32
    %v251 = vadd.s32 %v145, 32
    %v252 = vadd.s32 %v152, 32
    %v253 = vadd.s32 %v159, 32
    %v254 = vadd.s32 %v166, 32
    %v255 = vadd.s32 %v173, 32
    %v256 = vadd.s32 %v180, 32
    %v257 = vadd.s32 %v187, 32
    %v258 = vadd.s32 %v194, 32
    %v259 = vsel %vm227, %v243, %v89
    %v260 = vsel %vm228, %v244, %v96
    %v261 = vsel %vm229, %v245, %v103
    %v262 = vsel %vm230, %v246, %v110
    %v263 = vsel %vm231, %v247, %v117
    %v264 = vsel %vm232, %v248, %v124
    %v265 = vsel %vm233, %v249, %v131
    %v266 = vsel %vm234, %v250, %v138
    %v267 = vsel %vm235, %v251, %v145
    %v268 = vsel %vm236, %v252, %v152
    %v269 = vsel %vm237, %v253, %v159
    %v270 = vsel %vm238, %v254, %v166
    %v271 = vsel %vm239, %v255, %v173
    %v272 = vsel %vm240, %v256, %v180
    %v273 = vsel %vm241, %v257, %v187
    %v274 = vsel %vm242, %v258, %v194
    %vm275 = vcmp.eq.s32.totalorder %v259, 0
    %vm276 = vcmp.eq.s32.totalorder %v260, 0
    %vm277 = vcmp.eq.s32.totalorder %v261, 0
    %vm278 = vcmp.eq.s32.totalorder %v262, 0
    %vm279 = vcmp.eq.s32.totalorder %v263, 0
    %vm280 = vcmp.eq.s32.totalorder %v264, 0
    %vm281 = vcmp.eq.s32.totalorder %v265, 0
    %vm282 = vcmp.eq.s32.totalorder %v266, 0
    %vm283 = vcmp.eq.s32.totalorder %v267, 0
    %vm284 = vcmp.eq.s32.totalorder %v268, 0
    %vm285 = vcmp.eq.s32.totalorder %v269, 0
    %vm286 = vcmp.eq.s32.totalorder %v270, 0
    %vm287 = vcmp.eq.s32.totalorder %v271, 0
    %vm288 = vcmp.eq.s32.totalorder %v272, 0
    %vm289 = vcmp.eq.s32.totalorder %v273, 0
    %vm290 = vcmp.eq.s32.totalorder %v274, 0
    %v291 = vrot.slane %v50, 7
    %v292 = vrot.slane %v51, 7
    %v293 = vrot.slane %v52, 7
    %v294 = vrot.slane %v53, 7
    %v295 = vrot.slane %v54, 7
    %v296 = vrot.slane %v55, 7
    %v297 = vrot.slane %v56, 7
    %v298 = vrot.slane %v57, 7
    %v299 = vrot.slane %v58, 7
    %v300 = vrot.slane %v59, 7
    %v301 = vrot.slane %v60, 7
    %v302 = vrot.slane %v61, 7
    %v303 = vrot.slane %v62, 7
    %v304 = vrot.slane %v63, 7
    %v305 = vrot.slane %v64, 7
    %v306 = vrot.slane %v65, 7
    %vm307 = vcmp.lt.s32.totalorder %v67, 1
    %v308 = vsel %vm307, %v305, %v306
    %v309 = vsel %vm307, %v304, %v305
    %v310 = vsel %vm307, %v303, %v304
    %v311 = vsel %vm307, %v302, %v303
    %v312 = vsel %vm307, %v301, %v302
    %v313 = vsel %vm307, %v300, %v301
    %v314 = vsel %vm307, %v299, %v300
    %v315 = vsel %vm307, %v298, %v299
    %v316 = vsel %vm307, %v297, %v298
    %v317 = vsel %vm307, %v296, %v297
    %v318 = vsel %vm307, %v295, %v296
    %v319 = vsel %vm307, %v294, %v295
    %v320 = vsel %vm307, %v293, %v294
    %v321 = vsel %vm307, %v292, %v293
    %v322 = vsel %vm307, %v291, %v292
    %v323 = vsel %vm307, %v306, %v291
    %v324 = vsel %vm275, 0.0, %v323
    %v325 = vsel %vm276, 0.0, %v322
    %v326 = vsel %vm277, 0.0, %v321
    %v327 = vsel %vm278, 0.0, %v320
    %v328 = vsel %vm279, 0.0, %v319
    %v329 = vsel %vm280, 0.0, %v318
    %v330 = vsel %vm281, 0.0, %v317
    %v331 = vsel %vm282, 0.0, %v316
    %v332 = vsel %vm283, 0.0, %v315
    %v333 = vsel %vm284, 0.0, %v314
    %v334 = vsel %vm285, 0.0, %v313
    %v335 = vsel %vm286, 0.0, %v312
    %v336 = vsel %vm287, 0.0, %v311
    %v337 = vsel %vm288, 0.0, %v310
    %v338 = vsel %vm289, 0.0, %v309
    %v339 = vsel %vm290, 0.0, %v308
    %vm340 = vcmp.eq.s32.totalorder %v259, 31
    %vm341 = vcmp.eq.s32.totalorder %v260, 31
    %vm342 = vcmp.eq.s32.totalorder %v261, 31
    %vm343 = vcmp.eq.s32.totalorder %v262, 31
    %vm344 = vcmp.eq.s32.totalorder %v263, 31
    %vm345 = vcmp.eq.s32.totalorder %v264, 31
    %vm346 = vcmp.eq.s32.totalorder %v265, 31
    %vm347 = vcmp.eq.s32.totalorder %v266, 31
    %vm348 = vcmp.eq.s32.totalorder %v267, 31
    %vm349 = vcmp.eq.s32.totalorder %v268, 31
    %vm350 = vcmp.eq.s32.totalorder %v269, 31
    %vm351 = vcmp.eq.s32.totalorder %v270, 31
    %vm352 = vcmp.eq.s32.totalorder %v271, 31
    %vm353 = vcmp.eq.s32.totalorder %v272, 31
    %vm354 = vcmp.eq.s32.totalorder %v273, 31
    %vm355 = vcmp.eq.s32.totalorder %v274, 31
    %v356 = vrot.slane %v50, 1
    %v357 = vrot.slane %v51, 1
    %v358 = vrot.slane %v52, 1
    %v359 = vrot.slane %v53, 1
    %v360 = vrot.slane %v54, 1
    %v361 = vrot.slane %v55, 1
    %v362 = vrot.slane %v56, 1
    %v363 = vrot.slane %v57, 1
    %v364 = vrot.slane %v58, 1
    %v365 = vrot.slane %v59, 1
    %v366 = vrot.slane %v60, 1
    %v367 = vrot.slane %v61, 1
    %v368 = vrot.slane %v62, 1
    %v369 = vrot.slane %v63, 1
    %v370 = vrot.slane %v64, 1
    %v371 = vrot.slane %v65, 1
    %vm372 = vcmp.lt.s32.totalorder %v67, 7
    %v373 = vsel %vm372, %v370, %v371
    %v374 = vsel %vm372, %v369, %v370
    %v375 = vsel %vm372, %v368, %v369
    %v376 = vsel %vm372, %v367, %v368
    %v377 = vsel %vm372, %v366, %v367
    %v378 = vsel %vm372, %v365, %v366
    %v379 = vsel %vm372, %v364, %v365
    %v380 = vsel %vm372, %v363, %v364
    %v381 = vsel %vm372, %v362, %v363
    %v382 = vsel %vm372, %v361, %v362
    %v383 = vsel %vm372, %v360, %v361
    %v384 = vsel %vm372, %v359, %v360
    %v385 = vsel %vm372, %v358, %v359
    %v386 = vsel %vm372, %v357, %v358
    %v387 = vsel %vm372, %v356, %v357
    %v388 = vsel %vm372, %v371, %v356
    %v389 = vsel %vm340, 0.0, %v387
    %v390 = vsel %vm341, 0.0, %v386
    %v391 = vsel %vm342, 0.0, %v385
    %v392 = vsel %vm343, 0.0, %v384
    %v393 = vsel %vm344, 0.0, %v383
    %v394 = vsel %vm345, 0.0, %v382
    %v395 = vsel %vm346, 0.0, %v381
    %v396 = vsel %vm347, 0.0, %v380
    %v397 = vsel %vm348, 0.0, %v379
    %v398 = vsel %vm349, 0.0, %v378
    %v399 = vsel %vm350, 0.0, %v377
    %v400 = vsel %vm351, 0.0, %v376
    %v401 = vsel %vm352, 0.0, %v375
    %v402 = vsel %vm353, 0.0, %v374
    %v403 = vsel %vm354, 0.0, %v373
    %v404 = vsel %vm355, 0.0, %v388
    %v405 = vld [vmem:[%s1] sm:$0xff]
    %v406 = vld [vmem:[%s1 + $0x8] sm:$0xff]
    %s407 = scalar_lea.vmem %s1, 16
    %v408 = vld [vmem:[%s407] sm:$0xff]
    %v409 = vld [vmem:[%s407 + $0x8] sm:$0xff]
    %vm410 = vcmask 130048
    %v412 = vsel %vm410, %v50, 0
    %v415 = vsel %vm410, %v51, 0
    %v418 = vsel %vm410, %v52, 0
    %v421 = vsel %vm410, %v53, 0
    %v424 = vsel %vm410, %v54, 0
    %v427 = vsel %vm410, %v55, 0
    %v430 = vsel %vm410, %v56, 0
    %v433 = vsel %vm410, %v57, 0
    %v436 = vsel %vm410, %v58, 0
    %v439 = vsel %vm410, %v59, 0
    %v442 = vsel %vm410, %v60, 0
    %v445 = vsel %vm410, %v61, 0
    %v448 = vsel %vm410, %v62, 0
    %v451 = vsel %vm410, %v63, 0
    %v454 = vsel %vm410, %v64, 0
    %v457 = vsel %vm410, %v65, 0
    %459 = vmatpush.msra.mxu0 0.0
    %460 = vmatpush.msra.mxu0 0.0
    %461 = vmatpush.msra.mxu0 0.0
    %462 = vmatpush.msra.mxu0 0.0
    %463 = vmatpush.msra.mxu0 0.0
    %464 = vmatpush.msra.mxu0 0.0
    %465 = vmatpush.msra.mxu0 0.0
    %466 = vmatpush.msra.mxu0 0.0
    %467 = vmatpush.msra.mxu0 0.0
    %468 = vmatpush.msra.mxu0 0.0
    %469 = vmatpush.msra.mxu0 0.0
    %470 = vmatpush.msra.mxu0 0.0
    %471 = vmatpush.msra.mxu0 0.0
    %472 = vmatpush.msra.mxu0 0.0
    %473 = vmatpush.msra.mxu0 %v409
    %474 = vmatpush.msra.mxu0 %v408
    %475 = vmatmul.f32.gmra.mxu0 %v412
    %v476 = vpop.f32.mrf.mxu0
    %v477 = vadd.f32 0.0, %v476
    %478 = vmatmul.f32.gmra.mxu0 %v415
    %v479 = vpop.f32.mrf.mxu0
    %v480 = vadd.f32 0.0, %v479
    %481 = vmatmul.f32.gmra.mxu0 %v418
    %v482 = vpop.f32.mrf.mxu0
    %v483 = vadd.f32 0.0, %v482
    %484 = vmatmul.f32.gmra.mxu0 %v421
    %v485 = vpop.f32.mrf.mxu0
    %v486 = vadd.f32 0.0, %v485
    %487 = vmatmul.f32.gmra.mxu0 %v424
    %v488 = vpop.f32.mrf.mxu0
    %v489 = vadd.f32 0.0, %v488
    %490 = vmatmul.f32.gmra.mxu0 %v427
    %v491 = vpop.f32.mrf.mxu0
    %v492 = vadd.f32 0.0, %v491
    %493 = vmatmul.f32.gmra.mxu0 %v430
    %v494 = vpop.f32.mrf.mxu0
    %v495 = vadd.f32 0.0, %v494
    %496 = vmatmul.f32.gmra.mxu0 %v433
    %v497 = vpop.f32.mrf.mxu0
    %v498 = vadd.f32 0.0, %v497
    %499 = vmatmul.f32.gmra.mxu0 %v436
    %v500 = vpop.f32.mrf.mxu0
    %v501 = vadd.f32 0.0, %v500
    %502 = vmatmul.f32.gmra.mxu0 %v439
    %v503 = vpop.f32.mrf.mxu0
    %v504 = vadd.f32 0.0, %v503
    %505 = vmatmul.f32.gmra.mxu0 %v442
    %v506 = vpop.f32.mrf.mxu0
    %v507 = vadd.f32 0.0, %v506
    %508 = vmatmul.f32.gmra.mxu0 %v445
    %v509 = vpop.f32.mrf.mxu0
    %v510 = vadd.f32 0.0, %v509
    %511 = vmatmul.f32.gmra.mxu0 %v448
    %v512 = vpop.f32.mrf.mxu0
    %v513 = vadd.f32 0.0, %v512
    %514 = vmatmul.f32.gmra.mxu0 %v451
    %v515 = vpop.f32.mrf.mxu0
    %v516 = vadd.f32 0.0, %v515
    %517 = vmatmul.f32.gmra.mxu0 %v454
    %v518 = vpop.f32.mrf.mxu0
    %v519 = vadd.f32 0.0, %v518
    %520 = vmatmul.f32.gmra.mxu0 %v457
    %v521 = vpop.f32.mrf.mxu0
    %v522 = vadd.f32 0.0, %v521
    %523 = vdwg.mxu0
    %v525 = vsel %vm410, %v324, 0
    %v528 = vsel %vm410, %v325, 0
    %v531 = vsel %vm410, %v326, 0
    %v534 = vsel %vm410, %v327, 0
    %v537 = vsel %vm410, %v328, 0
    %v540 = vsel %vm410, %v329, 0
    %v543 = vsel %vm410, %v330, 0
    %v546 = vsel %vm410, %v331, 0
    %v549 = vsel %vm410, %v332, 0
    %v552 = vsel %vm410, %v333, 0
    %v555 = vsel %vm410, %v334, 0
    %v558 = vsel %vm410, %v335, 0
    %v561 = vsel %vm410, %v336, 0
    %v564 = vsel %vm410, %v337, 0
    %v567 = vsel %vm410, %v338, 0
    %v570 = vsel %vm410, %v339, 0
    %572 = vmatpush.msra.mxu0 0.0
    %573 = vmatpush.msra.mxu0 0.0
    %574 = vmatpush.msra.mxu0 0.0
    %575 = vmatpush.msra.mxu0 0.0
    %576 = vmatpush.msra.mxu0 0.0
    %577 = vmatpush.msra.mxu0 0.0
    %578 = vmatpush.msra.mxu0 0.0
    %579 = vmatpush.msra.mxu0 0.0
    %580 = vmatpush.msra.mxu0 0.0
    %581 = vmatpush.msra.mxu0 0.0
    %582 = vmatpush.msra.mxu0 0.0
    %583 = vmatpush.msra.mxu0 0.0
    %584 = vmatpush.msra.mxu0 0.0
    %585 = vmatpush.msra.mxu0 0.0
    %586 = vmatpush.msra.mxu0 %v406
    %587 = vmatpush.msra.mxu0 %v405
    %588 = vmatmul.f32.gmra.mxu0 %v525
    %v589 = vpop.f32.mrf.mxu0
    %v590 = vadd.f32 %v477, %v589
    %591 = vmatmul.f32.gmra.mxu0 %v528
    %v592 = vpop.f32.mrf.mxu0
    %v593 = vadd.f32 %v480, %v592
    %594 = vmatmul.f32.gmra.mxu0 %v531
    %v595 = vpop.f32.mrf.mxu0
    %v596 = vadd.f32 %v483, %v595
    %597 = vmatmul.f32.gmra.mxu0 %v534
    %v598 = vpop.f32.mrf.mxu0
    %v599 = vadd.f32 %v486, %v598
    %600 = vmatmul.f32.gmra.mxu0 %v537
    %v601 = vpop.f32.mrf.mxu0
    %v602 = vadd.f32 %v489, %v601
    %603 = vmatmul.f32.gmra.mxu0 %v540
    %v604 = vpop.f32.mrf.mxu0
    %v605 = vadd.f32 %v492, %v604
    %606 = vmatmul.f32.gmra.mxu0 %v543
    %v607 = vpop.f32.mrf.mxu0
    %v608 = vadd.f32 %v495, %v607
    %609 = vmatmul.f32.gmra.mxu0 %v546
    %v610 = vpop.f32.mrf.mxu0
    %v611 = vadd.f32 %v498, %v610
    %612 = vmatmul.f32.gmra.mxu0 %v549
    %v613 = vpop.f32.mrf.mxu0
    %v614 = vadd.f32 %v501, %v613
    %615 = vmatmul.f32.gmra.mxu0 %v552
    %v616 = vpop.f32.mrf.mxu0
    %v617 = vadd.f32 %v504, %v616
    %618 = vmatmul.f32.gmra.mxu0 %v555
    %v619 = vpop.f32.mrf.mxu0
    %v620 = vadd.f32 %v507, %v619
    %621 = vmatmul.f32.gmra.mxu0 %v558
    %v622 = vpop.f32.mrf.mxu0
    %v623 = vadd.f32 %v510, %v622
    %624 = vmatmul.f32.gmra.mxu0 %v561
    %v625 = vpop.f32.mrf.mxu0
    %v626 = vadd.f32 %v513, %v625
    %627 = vmatmul.f32.gmra.mxu0 %v564
    %v628 = vpop.f32.mrf.mxu0
    %v629 = vadd.f32 %v516, %v628
    %630 = vmatmul.f32.gmra.mxu0 %v567
    %v631 = vpop.f32.mrf.mxu0
    %v632 = vadd.f32 %v519, %v631
    %633 = vmatmul.f32.gmra.mxu0 %v570
    %v634 = vpop.f32.mrf.mxu0
    %v635 = vadd.f32 %v522, %v634
    %636 = vdwg.mxu0
    %s637 = scalar_lea.vmem %s1, 32
    %v638 = vld [vmem:[%s637] sm:$0xff]
    %v639 = vld [vmem:[%s637 + $0x8] sm:$0xff]
    %v641 = vsel %vm410, %v389, 0
    %v644 = vsel %vm410, %v390, 0
    %v647 = vsel %vm410, %v391, 0
    %v650 = vsel %vm410, %v392, 0
    %v653 = vsel %vm410, %v393, 0
    %v656 = vsel %vm410, %v394, 0
    %v659 = vsel %vm410, %v395, 0
    %v662 = vsel %vm410, %v396, 0
    %v665 = vsel %vm410, %v397, 0
    %v668 = vsel %vm410, %v398, 0
    %v671 = vsel %vm410, %v399, 0
    %v674 = vsel %vm410, %v400, 0
    %v677 = vsel %vm410, %v401, 0
    %v680 = vsel %vm410, %v402, 0
    %v683 = vsel %vm410, %v403, 0
    %v686 = vsel %vm410, %v404, 0
    %688 = vmatpush.msra.mxu0 0.0
    %689 = vmatpush.msra.mxu0 0.0
    %690 = vmatpush.msra.mxu0 0.0
    %691 = vmatpush.msra.mxu0 0.0
    %692 = vmatpush.msra.mxu0 0.0
    %693 = vmatpush.msra.mxu0 0.0
    %694 = vmatpush.msra.mxu0 0.0
    %695 = vmatpush.msra.mxu0 0.0
    %696 = vmatpush.msra.mxu0 0.0
    %697 = vmatpush.msra.mxu0 0.0
    %698 = vmatpush.msra.mxu0 0.0
    %699 = vmatpush.msra.mxu0 0.0
    %700 = vmatpush.msra.mxu0 0.0
    %701 = vmatpush.msra.mxu0 0.0
    %702 = vmatpush.msra.mxu0 %v639
    %703 = vmatpush.msra.mxu0 %v638
    %704 = vmatmul.f32.gmra.mxu0 %v641
    %v705 = vpop.f32.mrf.mxu0
    %v706 = vadd.f32 0.0, %v705
    %707 = vmatmul.f32.gmra.mxu0 %v644
    %v708 = vpop.f32.mrf.mxu0
    %v709 = vadd.f32 0.0, %v708
    %710 = vmatmul.f32.gmra.mxu0 %v647
    %v711 = vpop.f32.mrf.mxu0
    %v712 = vadd.f32 0.0, %v711
    %713 = vmatmul.f32.gmra.mxu0 %v650
    %v714 = vpop.f32.mrf.mxu0
    %v715 = vadd.f32 0.0, %v714
    %716 = vmatmul.f32.gmra.mxu0 %v653
    %v717 = vpop.f32.mrf.mxu0
    %v718 = vadd.f32 0.0, %v717
    %719 = vmatmul.f32.gmra.mxu0 %v656
    %v720 = vpop.f32.mrf.mxu0
    %v721 = vadd.f32 0.0, %v720
    %722 = vmatmul.f32.gmra.mxu0 %v659
    %v723 = vpop.f32.mrf.mxu0
    %v724 = vadd.f32 0.0, %v723
    %725 = vmatmul.f32.gmra.mxu0 %v662
    %v726 = vpop.f32.mrf.mxu0
    %v727 = vadd.f32 0.0, %v726
    %728 = vmatmul.f32.gmra.mxu0 %v665
    %v729 = vpop.f32.mrf.mxu0
    %v730 = vadd.f32 0.0, %v729
    %731 = vmatmul.f32.gmra.mxu0 %v668
    %v732 = vpop.f32.mrf.mxu0
    %v733 = vadd.f32 0.0, %v732
    %734 = vmatmul.f32.gmra.mxu0 %v671
    %v735 = vpop.f32.mrf.mxu0
    %v736 = vadd.f32 0.0, %v735
    %737 = vmatmul.f32.gmra.mxu0 %v674
    %v738 = vpop.f32.mrf.mxu0
    %v739 = vadd.f32 0.0, %v738
    %740 = vmatmul.f32.gmra.mxu0 %v677
    %v741 = vpop.f32.mrf.mxu0
    %v742 = vadd.f32 0.0, %v741
    %743 = vmatmul.f32.gmra.mxu0 %v680
    %v744 = vpop.f32.mrf.mxu0
    %v745 = vadd.f32 0.0, %v744
    %746 = vmatmul.f32.gmra.mxu0 %v683
    %v747 = vpop.f32.mrf.mxu0
    %v748 = vadd.f32 0.0, %v747
    %749 = vmatmul.f32.gmra.mxu0 %v686
    %v750 = vpop.f32.mrf.mxu0
    %v751 = vadd.f32 0.0, %v750
    %752 = vdwg.mxu0
    %v753 = vadd.f32 %v590, %v706
    %v754 = vadd.f32 %v593, %v709
    %v755 = vadd.f32 %v596, %v712
    %v756 = vadd.f32 %v599, %v715
    %v757 = vadd.f32 %v602, %v718
    %v758 = vadd.f32 %v605, %v721
    %v759 = vadd.f32 %v608, %v724
    %v760 = vadd.f32 %v611, %v727
    %v761 = vadd.f32 %v614, %v730
    %v762 = vadd.f32 %v617, %v733
    %v763 = vadd.f32 %v620, %v736
    %v764 = vadd.f32 %v623, %v739
    %v765 = vadd.f32 %v626, %v742
    %v766 = vadd.f32 %v629, %v745
    %v767 = vadd.f32 %v632, %v748
    %v768 = vadd.f32 %v635, %v751
    %769 = vst.msk [vmem:[%s47] sm:$0xff] %vm410, %v753
    %770 = vst.msk [vmem:[%s47 + $0x8] sm:$0xff] %vm410, %v754
    %771 = vst.msk [vmem:[%s47 + $0x10] sm:$0xff] %vm410, %v755
    %772 = vst.msk [vmem:[%s47 + $0x18] sm:$0xff] %vm410, %v756
    %773 = vst.msk [vmem:[%s47 + $0x20] sm:$0xff] %vm410, %v757
    %774 = vst.msk [vmem:[%s47 + $0x28] sm:$0xff] %vm410, %v758
    %775 = vst.msk [vmem:[%s47 + $0x30] sm:$0xff] %vm410, %v759
    %776 = vst.msk [vmem:[%s47 + $0x38] sm:$0xff] %vm410, %v760
    %777 = vst.msk [vmem:[%s47 + $0x40] sm:$0xff] %vm410, %v761
    %778 = vst.msk [vmem:[%s47 + $0x48] sm:$0xff] %vm410, %v762
    %779 = vst.msk [vmem:[%s47 + $0x50] sm:$0xff] %vm410, %v763
    %780 = vst.msk [vmem:[%s47 + $0x58] sm:$0xff] %vm410, %v764
    %781 = vst.msk [vmem:[%s47 + $0x60] sm:$0xff] %vm410, %v765
    %782 = vst.msk [vmem:[%s47 + $0x68] sm:$0xff] %vm410, %v766
    %783 = vst.msk [vmem:[%s47 + $0x70] sm:$0xff] %vm410, %v767
    %784 = vst.msk [vmem:[%s47 + $0x78] sm:$0xff] %vm410, %v768
    %p785 = scmp.eq.s32.totalorder 0, 0
    // Predicated region
    $region10: #{tpu_custom_call.1} parent=1 // pred_check
      %p786 = pneg %p785
    $region11: #{tpu_custom_call.1} parent=1 // pred_check_branch
      %788 = sbr.rel (%p786) target = $region13
    $region12: #{tpu_custom_call.1} parent=1 // pred_region
      %vm789 = vcmask 123904
      %790 = vst.msk [vmem:[#allocation2] sm:$0x3] %vm789, 0.0
    $region13: #{tpu_custom_call.1} parent=1 // pred_fallthru
      _
    %v791 = vsel %vm410, %v753, 0.0
    %v792 = vsel %vm410, %v754, 0.0
    %v793 = vadd.f32 %v791, %v792
    %v794 = vsel %vm410, %v755, 0.0
    %v795 = vadd.f32 %v793, %v794
    %v796 = vsel %vm410, %v756, 0.0
    %v797 = vadd.f32 %v795, %v796
    %v798 = vsel %vm410, %v757, 0.0
    %v799 = vadd.f32 %v797, %v798
    %v800 = vsel %vm410, %v758, 0.0
    %v801 = vadd.f32 %v799, %v800
    %v802 = vsel %vm410, %v759, 0.0
    %v803 = vadd.f32 %v801, %v802
    %v804 = vsel %vm410, %v760, 0.0
    %v805 = vadd.f32 %v803, %v804
    %v806 = vsel %vm410, %v761, 0.0
    %v807 = vadd.f32 %v805, %v806
    %v808 = vsel %vm410, %v762, 0.0
    %v809 = vadd.f32 %v807, %v808
    %v810 = vsel %vm410, %v763, 0.0
    %v811 = vadd.f32 %v809, %v810
    %v812 = vsel %vm410, %v764, 0.0
    %v813 = vadd.f32 %v811, %v812
    %v814 = vsel %vm410, %v765, 0.0
    %v815 = vadd.f32 %v813, %v814
    %v816 = vsel %vm410, %v766, 0.0
    %v817 = vadd.f32 %v815, %v816
    %v818 = vsel %vm410, %v767, 0.0
    %v819 = vadd.f32 %v817, %v818
    %v820 = vsel %vm410, %v768, 0.0
    %v821 = vadd.f32 %v819, %v820
    %v822 = vrot.slane %v821, 4
    %v823 = vadd.f32 %v821, %v822
    %v824 = vrot.slane %v823, 2
    %v825 = vadd.f32 %v823, %v824
    %v826 = vrot.slane %v825, 1
    %v827 = vadd.f32 %v825, %v826
    %v828 = vmul.f32 %v753, %v753
    %v829 = vmul.f32 %v754, %v754
    %v830 = vmul.f32 %v755, %v755
    %v831 = vmul.f32 %v756, %v756
    %v832 = vmul.f32 %v757, %v757
    %v833 = vmul.f32 %v758, %v758
    %v834 = vmul.f32 %v759, %v759
    %v835 = vmul.f32 %v760, %v760
    %v836 = vmul.f32 %v761, %v761
    %v837 = vmul.f32 %v762, %v762
    %v838 = vmul.f32 %v763, %v763
    %v839 = vmul.f32 %v764, %v764
    %v840 = vmul.f32 %v765, %v765
    %v841 = vmul.f32 %v766, %v766
    %v842 = vmul.f32 %v767, %v767
    %v843 = vmul.f32 %v768, %v768
    %v844 = vsel %vm410, %v828, 0.0
    %v845 = vsel %vm410, %v829, 0.0
    %v846 = vadd.f32 %v844, %v845
    %v847 = vsel %vm410, %v830, 0.0
    %v848 = vadd.f32 %v846, %v847
    %v849 = vsel %vm410, %v831, 0.0
    %v850 = vadd.f32 %v848, %v849
    %v851 = vsel %vm410, %v832, 0.0
    %v852 = vadd.f32 %v850, %v851
    %v853 = vsel %vm410, %v833, 0.0
    %v854 = vadd.f32 %v852, %v853
    %v855 = vsel %vm410, %v834, 0.0
    %v856 = vadd.f32 %v854, %v855
    %v857 = vsel %vm410, %v835, 0.0
    %v858 = vadd.f32 %v856, %v857
    %v859 = vsel %vm410, %v836, 0.0
    %v860 = vadd.f32 %v858, %v859
    %v861 = vsel %vm410, %v837, 0.0
    %v862 = vadd.f32 %v860, %v861
    %v863 = vsel %vm410, %v838, 0.0
    %v864 = vadd.f32 %v862, %v863
    %v865 = vsel %vm410, %v839, 0.0
    %v866 = vadd.f32 %v864, %v865
    %v867 = vsel %vm410, %v840, 0.0
    %v868 = vadd.f32 %v866, %v867
    %v869 = vsel %vm410, %v841, 0.0
    %v870 = vadd.f32 %v868, %v869
    %v871 = vsel %vm410, %v842, 0.0
    %v872 = vadd.f32 %v870, %v871
    %v873 = vsel %vm410, %v843, 0.0
    %v874 = vadd.f32 %v872, %v873
    %v875 = vrot.slane %v874, 4
    %v876 = vadd.f32 %v874, %v875
    %v877 = vrot.slane %v876, 2
    %v878 = vadd.f32 %v876, %v877
    %v879 = vrot.slane %v878, 1
    %v880 = vadd.f32 %v878, %v879
    %v881 = vld [vmem:[#allocation2] sm:$0x3]
    %vm882 = vcmask 1040384
    %v883 = vsel %vm882, %v827, %v880
    %v884 = vadd.f32 %v881, %v883
    %vm885 = vcmask 123904
    %886 = vst.msk [vmem:[#allocation2] sm:$0x3] %vm885, %v884
    %s887 = sadd.s32 0, 0
    %s888 = smul.u32 16, %s887
    %p889 = scmp.lt.s32.totalorder %s888, 15
    %s890 = scalar_select %p889, %s888, 15
    %s891 = smul.addr %s890, 8
    %s892 = scalar_lea.vmem %s2, %s891
    // Predicated region
    $region14: #{tpu_custom_call.1} parent=1 // pred_check
      _
    $region15: #{tpu_custom_call.1} parent=1 // pred_check_branch
      %894 = sbr.rel (0) target = $region17
    $region16: #{tpu_custom_call.1} parent=1 // pred_region
      %s895 = sadd.s32 0, 0
      %s896 = smul.u32 16, %s895
    $region17: #{tpu_custom_call.1} parent=1 // pred_fallthru
      _
    // Predicated region
    $region18: #{tpu_custom_call.1} parent=1 // pred_check
      _
    $region19: #{tpu_custom_call.1} parent=1 // pred_check_branch
      %898 = sbr.rel (0) target = $region21
    $region20: #{tpu_custom_call.1} parent=1 // pred_region
      %900 = vsyncadd [#allocation3], 0
      %s902 = sshll.u32 [#allocation2], 4
      %s903 = int_to_ptr.vmem [resolvable:$true] %s902
      %s904 = sshll.u32 %s3, 4
      %s905 = int_to_ptr.hbm [resolvable:$true] %s904
      %907 = dma.vmem_to_hbm [thread:$0]  %s903, 32, %s905, [#allocation3]
    $region21: #{tpu_custom_call.1} parent=1 // pred_fallthru
      _
    // Predicated region
    $region22: #{tpu_custom_call.1} parent=1 // pred_check
      _
    $region23: #{tpu_custom_call.1} parent=1 // pred_check_branch
      %909 = sbr.rel (0) target = $region25
    $region24: #{tpu_custom_call.1} parent=1 // pred_region
      %s910 = sadd.s32 0, 0
      %s911 = smul.u32 16, %s910
      %p912 = scmp.lt.s32.totalorder %s911, 15
      %s913 = scalar_select %p912, %s911, 15
      %s914 = smul.addr %s913, 8
      %s915 = scalar_lea.vmem %s2, %s914
    $region25: #{tpu_custom_call.1} parent=1 // pred_fallthru
      _
    // Predicated region
    $region26: #{tpu_custom_call.1} parent=1 // pred_check
      _
    $region27: #{tpu_custom_call.1} parent=1 // pred_check_branch
      %917 = sbr.rel (0) target = $region29
    $region28: #{tpu_custom_call.1} parent=1 // pred_region
      %919 = dma.done [#allocation3], 32
    $region29: #{tpu_custom_call.1} parent=1 // pred_fallthru
      _
    %920 = vsyncpa [#allocation3], 1

</llo_original>
